<compile_context>
chip_gen: v5e
topology: v5e:2x2
jax: 0.10.0
libtpu: 0.0.40
codegen_flags: <defaults>
</compile_context>

<pallas_src>
import functools

import jax
import jax.numpy as jnp
from jax.experimental import pallas as pl
from jax.experimental.pallas import tpu as pltpu

EPS = 1e-5


# ---------------------------------------------------------------------------
# VMEM / tile sizing
# ---------------------------------------------------------------------------

def _vmem_limit_bytes():
    """Per-generation VMEM limit (~75% of physical: ~48 MiB on v7x, ~96 MiB
    on v5e/v6e). Falls back to a conservative value if the query fails."""
    phys = None
    try:
        info = pltpu.get_tpu_info()
        phys = getattr(info, "vmem_capacity_bytes", None)
    except Exception:
        phys = None
    if not phys:
        phys = 64 << 20                      # assume the smallest (v7x) VMEM
    limit = int(phys * 0.75)
    return max(32 << 20, min(limit, 100 << 20))


def _sublane_pack(itemsize):
    # Rows packed per vreg sublane tile: 8 for f32, 16 for bf16, 32 for int8.
    return max(8, 32 // itemsize)


def _per_elem_bytes(itemsize):
    # Double-buffered input + output blocks, plus in-kernel f32 temporaries
    # (upcast copy / centered term before the final cast back to x.dtype).
    temps = 4 if itemsize == 4 else 8
    return 4 * itemsize + temps


def _choose_c_tile(n, c, hw, itemsize, budget_bytes):
    """Largest legal channel tile for the fused single-pass kernel, or None
    if even the smallest legal tile does not fit the VMEM budget."""
    pack = _sublane_pack(itemsize)
    per_channel = n * hw * _per_elem_bytes(itemsize)

    step = pack if c % pack == 0 else 8
    cands = []
    ct = step
    while ct <= c:
        if c % ct == 0 and ct * per_channel <= budget_bytes:
            cands.append(ct)
        ct += step
    if not cands and c % 8 != 0 and c * per_channel <= budget_bytes:
        cands = [c]                          # sublane dim must be 8k or == C
    if not cands:
        return None                          # -> two-pass streaming path
    # Prefer tiles that leave >= 4 grid steps so the parallel channel axis
    # can shard across both v7x TensorCores; otherwise take the largest fit.
    multi = [t for t in cands if c // t >= 4]
    return max(multi) if multi else max(cands)


def _choose_two_pass_tiles(n, c, hw, itemsize, budget_bytes):
    """(c_tile, hw_tile) for the two-pass streaming path."""
    pack = _sublane_pack(itemsize)
    if c % pack == 0:
        c_tile = pack
    elif c % 8 == 0:
        c_tile = 8
    else:
        c_tile = c
    per_lane = n * c_tile * _per_elem_bytes(itemsize)
    hw_tile = max(128, (budget_bytes // max(per_lane, 1)) // 128 * 128)
    if hw_tile >= hw:
        hw_tile = hw                         # single lane block (full dim)
    return c_tile, hw_tile


# ---------------------------------------------------------------------------
# Kernels
# ---------------------------------------------------------------------------

def _channel_params(ref, ci, c_tile):
    """This grid step's (c_tile, 1) rows from an untiled resident (C, 1) ref."""
    if ref.shape[0] == c_tile:               # static branch (single block)
        blk = ref[...]
    else:
        start = pl.multiple_of(ci * c_tile, c_tile)   # sublane-aligned start
        blk = ref[pl.ds(start, c_tile), :]
    return blk.reshape(1, c_tile, 1)


def _bn_fused_kernel(x_ref, gamma_ref, beta_ref, o_ref, *, c_tile, eps):
    """Single-pass batch norm over a VMEM-resident (N, c_tile, HW) block."""
    ci = pl.program_id(0)
    xf = x_ref[...].astype(jnp.float32)
    n, _, hw = xf.shape
    inv_m = 1.0 / float(n * hw)

    # Per-channel mean: reduce lanes (HW) first, then the leading N axis.
    mean = jnp.sum(jnp.sum(xf, axis=2, keepdims=True), axis=0,
                   keepdims=True) * inv_m                       # (1, ct, 1)

    # Centered second sweep of the resident block for the variance
    # (no cancellation; extra VPU pass is hidden under the HBM DMA).
    d = xf - mean
    var = jnp.sum(jnp.sum(d * d, axis=2, keepdims=True), axis=0,
                  keepdims=True) * inv_m                        # (1, ct, 1)

    gamma = _channel_params(gamma_ref, ci, c_tile)
    beta = _channel_params(beta_ref, ci, c_tile)
    scale = gamma * jax.lax.rsqrt(var + eps)                    # EUP rsqrt
    shift = beta - mean * scale

    # Single fused mul-add per element.
    o_ref[...] = (xf * scale + shift).astype(o_ref.dtype)


def _bn_stats_kernel(x_ref, sum_ref, sumsq_ref, *, hw, hw_tile):
    """Pass 1 of the streaming path: per-channel (sum, sum_sq) accumulation.
    Outputs are resident across the HW grid axis (accumulator pattern)."""
    hj = pl.program_id(1)

    @pl.when(hj == 0)
    def _init():
        sum_ref[...] = jnp.zeros_like(sum_ref)
        sumsq_ref[...] = jnp.zeros_like(sumsq_ref)

    xf = x_ref[...].astype(jnp.float32)
    if hw % hw_tile != 0:
        # Mask the ragged tail HW block (out-of-bounds lanes are undefined).
        rem = hw - hj * hw_tile
        lane = jax.lax.broadcasted_iota(jnp.int32, (1, 1, hw_tile), 2)
        xf = jnp.where(lane < rem, xf, 0.0)

    s = jnp.sum(jnp.sum(xf, axis=2, keepdims=True), axis=0)         # (ct, 1)
    s2 = jnp.sum(jnp.sum(xf * xf, axis=2, keepdims=True), axis=0)   # (ct, 1)
    sum_ref[...] += s
    sumsq_ref[...] += s2


def _bn_apply_kernel(x_ref, scale_ref, shift_ref, o_ref, *, c_tile):
    """Pass 2 of the streaming path: y = x * scale + shift."""
    ci = pl.program_id(0)
    scale = _channel_params(scale_ref, ci, c_tile)
    shift = _channel_params(shift_ref, ci, c_tile)
    o_ref[...] = (x_ref[...].astype(jnp.float32) * scale
                  + shift).astype(o_ref.dtype)


# ---------------------------------------------------------------------------
# pallas_call wrappers
# ---------------------------------------------------------------------------

def _fused_call(x3, gamma, beta, eps, c_tile, vmem_limit):
    n, c, hw = x3.shape
    gamma2 = gamma.reshape(c, 1).astype(jnp.float32)
    beta2 = beta.reshape(c, 1).astype(jnp.float32)
    kernel = functools.partial(_bn_fused_kernel, c_tile=c_tile, eps=eps)
    return pl.pallas_call(
        kernel,
        out_shape=jax.ShapeDtypeStruct((n, c, hw), x3.dtype),
        grid_spec=pltpu.PrefetchScalarGridSpec(
            num_scalar_prefetch=0,
            grid=(c // c_tile,),
            in_specs=[
                pl.BlockSpec((n, c_tile, hw), lambda ci: (0, ci, 0)),
                # Full gamma/beta, constant block index -> fetched once.
                pl.BlockSpec((c, 1), lambda ci: (0, 0)),
                pl.BlockSpec((c, 1), lambda ci: (0, 0)),
            ],
            out_specs=pl.BlockSpec((n, c_tile, hw), lambda ci: (0, ci, 0)),
        ),
        compiler_params=pltpu.CompilerParams(
            dimension_semantics=("parallel",),
            vmem_limit_bytes=vmem_limit,
        ),
    )(x3, gamma2, beta2)


def _two_pass_call(x3, gamma, beta, eps, itemsize, budget, vmem_limit):
    n, c, hw = x3.shape
    c_tile, hw_tile = _choose_two_pass_tiles(n, c, hw, itemsize, budget)
    c_steps = c // c_tile
    hw_steps = pl.cdiv(hw, hw_tile)

    # ---- Pass 1: per-channel (sum, sum_sq) ----
    stats_kernel = functools.partial(_bn_stats_kernel, hw=hw, hw_tile=hw_tile)
    sum_x, sum_x2 = pl.pallas_call(
        stats_kernel,
        out_shape=(jax.ShapeDtypeStruct((c, 1), jnp.float32),
                   jax.ShapeDtypeStruct((c, 1), jnp.float32)),
        grid_spec=pltpu.PrefetchScalarGridSpec(
            num_scalar_prefetch=0,
            grid=(c_steps, hw_steps),
            in_specs=[pl.BlockSpec((n, c_tile, hw_tile),
                                   lambda ci, hj: (0, ci, hj))],
            out_specs=(pl.BlockSpec((c_tile, 1), lambda ci, hj: (ci, 0)),
                       pl.BlockSpec((c_tile, 1), lambda ci, hj: (ci, 0))),
        ),
        compiler_params=pltpu.CompilerParams(
            dimension_semantics=("parallel", "arbitrary"),
            vmem_limit_bytes=vmem_limit,
        ),
    )(x3)

    # Tiny (C,)-sized math: done in plain JAX (negligible cost).
    m = float(n * hw)
    mean = sum_x[:, 0] / m
    var = jnp.maximum(sum_x2[:, 0] / m - mean * mean, 0.0)
    scale = gamma.astype(jnp.float32) * jax.lax.rsqrt(var + eps)
    shift = beta.astype(jnp.float32) - mean * scale

    # ---- Pass 2: y = x * scale + shift ----
    apply_kernel = functools.partial(_bn_apply_kernel, c_tile=c_tile)
    return pl.pallas_call(
        apply_kernel,
        out_shape=jax.ShapeDtypeStruct((n, c, hw), x3.dtype),
        grid_spec=pltpu.PrefetchScalarGridSpec(
            num_scalar_prefetch=0,
            grid=(c_steps, hw_steps),
            in_specs=[
                pl.BlockSpec((n, c_tile, hw_tile), lambda ci, hj: (0, ci, hj)),
                pl.BlockSpec((c, 1), lambda ci, hj: (0, 0)),
                pl.BlockSpec((c, 1), lambda ci, hj: (0, 0)),
            ],
            out_specs=pl.BlockSpec((n, c_tile, hw_tile),
                                   lambda ci, hj: (0, ci, hj)),
        ),
        compiler_params=pltpu.CompilerParams(
            dimension_semantics=("parallel", "parallel"),
            vmem_limit_bytes=vmem_limit,
        ),
    )(x3, scale.reshape(c, 1), shift.reshape(c, 1))


def seeded_batchnorm2d(x_nchw, gamma, beta, eps=EPS, *,
                       force_two_pass=False, block_budget_bytes=None):
    """Training-mode BatchNorm2d forward. x: (N, C, H, W); gamma/beta: (C,)."""
    n, c, h, w = x_nchw.shape
    hw = h * w
    x3 = x_nchw.reshape(n, c, hw)            # free reshape, no data movement
    itemsize = jnp.dtype(x_nchw.dtype).itemsize

    vmem_limit = _vmem_limit_bytes()
    budget = (block_budget_bytes if block_budget_bytes is not None
              else int(vmem_limit * 0.7))

    c_tile = None if force_two_pass else _choose_c_tile(n, c, hw, itemsize,
                                                        budget)
    if c_tile is not None:
        out3 = _fused_call(x3, gamma, beta, eps, c_tile, vmem_limit)
    else:
        out3 = _two_pass_call(x3, gamma, beta, eps, itemsize, budget,
                              vmem_limit)
    return out3.reshape(n, c, h, w)           # free reshape back to NCHW


# ---------------------------------------------------------------------------
# Demo / correctness check
# ---------------------------------------------------------------------------

if __name__ == "__main__":
    key = jax.random.PRNGKey(0)
    k1, k2 = jax.random.split(key)

    def reference(x, gamma, beta):
        xf = x.astype(jnp.float32)
        mean = jnp.mean(xf, axis=(0, 2, 3), keepdims=True)
        var = jnp.mean((xf - mean) ** 2, axis=(0, 2, 3), keepdims=True)
        c = x.shape[1]
        y = (xf - mean) * jax.lax.rsqrt(var + EPS)
        return (y * gamma.reshape(1, c, 1, 1)
                + beta.reshape(1, c, 1, 1)).astype(x.dtype)

    # 1) Fused single-pass path (per-channel slab fits VMEM).
    N, C, H, W = 2, 4, 16, 16
    x = jax.random.normal(k1, (N, C, H, W), dtype=jnp.float32) * 2.0 + 0.5
    gamma = jnp.ones((C,), dtype=jnp.float32)    # nn.BatchNorm2d defaults
    beta = jnp.zeros((C,), dtype=jnp.float32)
    y = jax.block_until_ready(seeded_batchnorm2d(x, gamma, beta))
    assert jnp.allclose(y, reference(x, gamma, beta), atol=1e-5, rtol=1e-5), \
        "fused path mismatch vs reference"

    # 2) Two-pass streaming path (forced; ragged H*W tail block of 32 lanes).
    N2, C2, H2, W2 = 2, 8, 16, 10                # H*W = 160
    x2 = jax.random.normal(k2, (N2, C2, H2, W2), dtype=jnp.float32) + 1.0
    gamma2 = jnp.ones((C2,), dtype=jnp.float32)
    beta2 = jnp.zeros((C2,), dtype=jnp.float32)
    y2 = jax.block_until_ready(
        seeded_batchnorm2d(x2, gamma2, beta2,
                           force_two_pass=True, block_budget_bytes=64 * 1024))
    assert jnp.allclose(y2, reference(x2, gamma2, beta2),
                        atol=1e-4, rtol=1e-4), \
        "two-pass path mismatch vs reference"

    print("KERNEL_OK")
</pallas_src>

<mosaic_0001>
module attributes {stable_mosaic.version = 11 : i64} {
  func.func @_bn_fused_kernel(%arg0: i32, %arg1: memref<2x4x256xf32, #tpu.memory_space<vmem>>, %arg2: memref<4x1xf32, #tpu.memory_space<vmem>>, %arg3: memref<4x1xf32, #tpu.memory_space<vmem>>, %arg4: memref<2x4x256xf32, #tpu.memory_space<vmem>>) attributes {dimension_semantics = [#tpu.dimension_semantics<parallel>], iteration_bounds = array<i64: 1>, scalar_prefetch = 0 : i64, scratch_operands = 0 : i64, tpu.core_type = #tpu.core_type<tc>, window_params = [{transform_indices = @transform_0, window_bounds = array<i64: 2, 4, 256>}, {pipeline_mode = #tpu.pipeline_mode<synchronous>, transform_indices = @transform_1, window_bounds = array<i64: 4, 1>}, {pipeline_mode = #tpu.pipeline_mode<synchronous>, transform_indices = @transform_2, window_bounds = array<i64: 4, 1>}, {transform_indices = @transform_3, window_bounds = array<i64: 2, 4, 256>}]} {
    %c0 = arith.constant 0 : index
    %c0_0 = arith.constant 0 : index
    %c0_1 = arith.constant 0 : index
    %0 = vector.load %arg1[%c0, %c0_0, %c0_1] : memref<2x4x256xf32, #tpu.memory_space<vmem>>, vector<2x4x256xf32>
    %cst = arith.constant dense<0.000000e+00> : vector<2x4xf32>
    %1 = vector.multi_reduction <add>, %0, %cst [2] : vector<2x4x256xf32> to vector<2x4xf32>
    %2 = vector.shape_cast %1 : vector<2x4xf32> to vector<2x4x1xf32>
    %cst_2 = arith.constant dense<0.000000e+00> : vector<4x1xf32>
    %3 = vector.multi_reduction <add>, %2, %cst_2 [0] : vector<2x4x1xf32> to vector<4x1xf32>
    %4 = vector.shape_cast %3 : vector<4x1xf32> to vector<1x4x1xf32>
    %cst_3 = arith.constant 0.001953125 : f32
    %5 = vector.broadcast %cst_3 : f32 to vector<1x4x1xf32>
    %6 = arith.mulf %4, %5 : vector<1x4x1xf32>
    %7 = vector.broadcast %6 : vector<1x4x1xf32> to vector<2x4x256xf32>
    %8 = arith.subf %0, %7 : vector<2x4x256xf32>
    %9 = arith.mulf %8, %8 : vector<2x4x256xf32>
    %cst_4 = arith.constant dense<0.000000e+00> : vector<2x4xf32>
    %10 = vector.multi_reduction <add>, %9, %cst_4 [2] : vector<2x4x256xf32> to vector<2x4xf32>
    %11 = vector.shape_cast %10 : vector<2x4xf32> to vector<2x4x1xf32>
    %cst_5 = arith.constant dense<0.000000e+00> : vector<4x1xf32>
    %12 = vector.multi_reduction <add>, %11, %cst_5 [0] : vector<2x4x1xf32> to vector<4x1xf32>
    %13 = vector.shape_cast %12 : vector<4x1xf32> to vector<1x4x1xf32>
    %cst_6 = arith.constant 0.001953125 : f32
    %14 = vector.broadcast %cst_6 : f32 to vector<1x4x1xf32>
    %15 = arith.mulf %13, %14 : vector<1x4x1xf32>
    %c0_7 = arith.constant 0 : index
    %c0_8 = arith.constant 0 : index
    %16 = vector.load %arg2[%c0_7, %c0_8] : memref<4x1xf32, #tpu.memory_space<vmem>>, vector<4x1xf32>
    %17 = vector.shape_cast %16 : vector<4x1xf32> to vector<1x4x1xf32>
    %c0_9 = arith.constant 0 : index
    %c0_10 = arith.constant 0 : index
    %18 = vector.load %arg3[%c0_9, %c0_10] : memref<4x1xf32, #tpu.memory_space<vmem>>, vector<4x1xf32>
    %19 = vector.shape_cast %18 : vector<4x1xf32> to vector<1x4x1xf32>
    %cst_11 = arith.constant 9.99999974E-6 : f32
    %20 = vector.broadcast %cst_11 : f32 to vector<1x4x1xf32>
    %21 = arith.addf %15, %20 : vector<1x4x1xf32>
    %22 = math.rsqrt %21 : vector<1x4x1xf32>
    %23 = arith.mulf %17, %22 : vector<1x4x1xf32>
    %24 = arith.mulf %6, %23 : vector<1x4x1xf32>
    %25 = arith.subf %19, %24 : vector<1x4x1xf32>
    %26 = vector.broadcast %23 : vector<1x4x1xf32> to vector<2x4x256xf32>
    %27 = arith.mulf %0, %26 : vector<2x4x256xf32>
    %28 = vector.broadcast %25 : vector<1x4x1xf32> to vector<2x4x256xf32>
    %29 = arith.addf %27, %28 : vector<2x4x256xf32>
    %c0_12 = arith.constant 0 : index
    %c0_13 = arith.constant 0 : index
    %c0_14 = arith.constant 0 : index
    %30 = vector.load %arg4[%c0_12, %c0_13, %c0_14] : memref<2x4x256xf32, #tpu.memory_space<vmem>>, vector<2x4x256xf32>
    tpu.vector_store %arg4[%c0_12, %c0_13, %c0_14], %29 {strides = array<i32>} : memref<2x4x256xf32, #tpu.memory_space<vmem>>, vector<2x4x256xf32>,
    return
  }
  func.func @transform_0(%arg0: i32) -> (i32, i32, i32) {
    %c0_i32 = arith.constant 0 : i32
    %c0_i32_0 = arith.constant 0 : i32
    %c0_i32_1 = arith.constant 0 : i32
    return %c0_i32, %arg0, %c0_i32_0 : i32, i32, i32
  }
  func.func @transform_1(%arg0: i32) -> (i32, i32) {
    %c0_i32 = arith.constant 0 : i32
    %c0_i32_0 = arith.constant 0 : i32
    %c0_i32_1 = arith.constant 0 : i32
    return %c0_i32, %c0_i32_0 : i32, i32
  }
  func.func @transform_2(%arg0: i32) -> (i32, i32) {
    %c0_i32 = arith.constant 0 : i32
    %c0_i32_0 = arith.constant 0 : i32
    %c0_i32_1 = arith.constant 0 : i32
    return %c0_i32, %c0_i32_0 : i32, i32
  }
  func.func @transform_3(%arg0: i32) -> (i32, i32, i32) {
    %c0_i32 = arith.constant 0 : i32
    %c0_i32_0 = arith.constant 0 : i32
    %c0_i32_1 = arith.constant 0 : i32
    return %c0_i32, %arg0, %c0_i32_0 : i32, i32, i32
  }
}

</mosaic_0001>

<llo_original>
// kernel: tpu_custom_call.1
$region0: #{tpu_custom_call.1}
  #allocation0 [shape = 'u32[]', space=smem, size = 0x4, offset = 0x4, fixed_abs, tag = 'smem constant byte address 0x4 - core index']
  #allocation1 [shape = 'u32[72,128]{1,0:T(1,128)}', space=vmem, size = 0x9000, scoped, tag = 'internal scratch']
  %s0 = inlined_call_operand.hbm [shape: f32[2,4,256], index: 0, kind: input, shape index: {}]
  %s1 = inlined_call_operand.vmem [shape: f32[4,1], index: 1, kind: input, shape index: {}]
  %s2 = inlined_call_operand.vmem [shape: f32[4,1], index: 2, kind: input, shape index: {}]
  %s3 = inlined_call_operand.hbm [shape: f32[2,4,256], index: 3, kind: output, shape index: {}]
  %s4 = sld [smem:[#allocation0]]
  $region26: #{tpu_custom_call.1} parent=0
    _
  %s6 = ssub.s32 1, %s4
  %s7 = scalar_select 0, %s6, %s4
  $region1: #{tpu_custom_call.1} parent=0
    #allocation2 [shape = 'u8[8192]{0}', space=vmem, size = 0x2000, scoped, tag = 'input window, operand 0, single buffered']
    #allocation3 [shape = 's32[1]{0}', space=sflag, size = 0x4, scoped, tag = 'scoped memory for tpu_custom_call.1']
    #allocation4 [shape = 's32[1]{0}', space=sflag, size = 0x4, scoped, tag = 'scoped memory for tpu_custom_call.1']
    #allocation5 [shape = 'u8[8192]{0}', space=vmem, size = 0x2000, scoped, tag = 'output window, operand 0, single buffered']
    %8 = vsyncpa [#allocation3], 0
    %9 = vsyncpa [#allocation4], 0
    // Predicated region
    $region2: #{tpu_custom_call.1} parent=1 // pred_check
      _
    $region3: #{tpu_custom_call.1} parent=1 // pred_check_branch
      %11 = sbr.rel (0) target = $region5
    $region4: #{tpu_custom_call.1} parent=1 // pred_region
      %13 = vsyncadd [#allocation3], 0
      %s14 = sshll.u32 %s0, 4
      %s15 = int_to_ptr.hbm [resolvable:$true] %s14
      %s16 = sshll.u32 [#allocation2], 4
      %s17 = int_to_ptr.vmem [resolvable:$true] %s16
      %22 = dma.hbm_to_vmem [thread:$0]  %s15, 256, %s17, [#allocation3], 128, 128, 8
    $region5: #{tpu_custom_call.1} parent=1 // pred_fallthru
      _
    // Predicated region
    $region6: #{tpu_custom_call.1} parent=1 // pred_check
      _
    $region7: #{tpu_custom_call.1} parent=1 // pred_check_branch
      %24 = sbr.rel (0) target = $region9
    $region8: #{tpu_custom_call.1} parent=1 // pred_region
      _
    $region9: #{tpu_custom_call.1} parent=1 // pred_fallthru
      _
    // Predicated region
    $region10: #{tpu_custom_call.1} parent=1 // pred_check
      _
    $region11: #{tpu_custom_call.1} parent=1 // pred_check_branch
      %26 = sbr.rel (0) target = $region13
    $region12: #{tpu_custom_call.1} parent=1 // pred_region
      _
    $region13: #{tpu_custom_call.1} parent=1 // pred_fallthru
      _
    // Predicated region
    $region14: #{tpu_custom_call.1} parent=1 // pred_check
      _
    $region15: #{tpu_custom_call.1} parent=1 // pred_check_branch
      %28 = sbr.rel (0) target = $region17
    $region16: #{tpu_custom_call.1} parent=1 // pred_region
      %30 = dma.done [#allocation3], 256
    $region17: #{tpu_custom_call.1} parent=1 // pred_fallthru
      _
    %v31 = vld [vmem:[#allocation2] sm:$0xff]
    %v32 = vld [vmem:[#allocation2 + $0x8] sm:$0xff]
    %35 = vst [vmem:[#allocation1] ss:$2 sm:$0xff] %v31
    %v36 = vld.sshfl [vmem:[#allocation1] sm:$0xff pattern:$0x75316420]
    %v37 = vld.sshfl [vmem:[#allocation1 + $0x8] sm:$0xff pattern:$0x75316420]
    %s38 = scalar_lea.vmem [#allocation1], 16
    %39 = vst [vmem:[%s38] ss:$2 sm:$0xff] %v32
    %v40 = vld.sshfl [vmem:[#allocation1 + $0x10] sm:$0xff pattern:$0x75316420]
    %v41 = vld.sshfl [vmem:[#allocation1 + $0x18] sm:$0xff pattern:$0x75316420]
    %vm46 = vcmask 1043456
    %v47 = vsel %vm46, %v36, 0.0
    %v48 = vsel %vm46, %v37, 0.0
    %v49 = vadd.f32 %v47, %v48
    %50 = vadd.xlane.f32.xlu0 %v49
    %v51 = vpop.xlane.xlu0 %50
    %v52 = vsel %vm46, %v40, 0.0
    %v53 = vsel %vm46, %v41, 0.0
    %v54 = vadd.f32 %v52, %v53
    %55 = vadd.xlane.f32.xlu0 %v54
    %v56 = vpop.xlane.xlu0 %55
    %v57 = vsel %vm46, %v51, 0.0
    %v58 = vsel %vm46, %v56, 0.0
    %v59 = vadd.f32 %v57, %v58
    %v60 = vmul.f32 %v59, 0.001953125
    %v63 = vunpack.c.l.s4 839922192
    %v64 = vunpack.c.0.s8 %v63
    %v65 = vperm.slane %v60, %v64
    %v67 = vsub.f32 %v31, %v65
    %v68 = vsub.f32 %v32, %v65
    %v69 = vmul.f32 %v67, %v67
    %v70 = vmul.f32 %v68, %v68
    %73 = vst [vmem:[#allocation1] ss:$2 sm:$0xff] %v69
    %v74 = vld.sshfl [vmem:[#allocation1] sm:$0xff pattern:$0x75316420]
    %v75 = vld.sshfl [vmem:[#allocation1 + $0x8] sm:$0xff pattern:$0x75316420]
    %s76 = scalar_lea.vmem [#allocation1], 16
    %77 = vst [vmem:[%s76] ss:$2 sm:$0xff] %v70
    %v78 = vld.sshfl [vmem:[#allocation1 + $0x10] sm:$0xff pattern:$0x75316420]
    %v79 = vld.sshfl [vmem:[#allocation1 + $0x18] sm:$0xff pattern:$0x75316420]
    %v84 = vsel %vm46, %v74, 0.0
    %v85 = vsel %vm46, %v75, 0.0
    %v86 = vadd.f32 %v84, %v85
    %87 = vadd.xlane.f32.xlu0 %v86
    %v88 = vpop.xlane.xlu0 %87
    %v89 = vsel %vm46, %v78, 0.0
    %v90 = vsel %vm46, %v79, 0.0
    %v91 = vadd.f32 %v89, %v90
    %92 = vadd.xlane.f32.xlu0 %v91
    %v93 = vpop.xlane.xlu0 %92
    %v94 = vsel %vm46, %v88, 0.0
    %v95 = vsel %vm46, %v93, 0.0
    %v96 = vadd.f32 %v94, %v95
    %v97 = vmul.f32 %v96, 0.001953125
    %v98 = vld [vmem:[%s1] sm:$0xf]
    %v99 = vld [vmem:[%s2] sm:$0xf]
    %v100 = vadd.f32 %v97, 1e-05
    %v101 = vrsqrt.pop %v100
    %v102 = vmul.f32 %v101, %v100
    %v103 = vmul.f32 %v102, %v101
    %v104 = vmul.f32 0.5, %v103
    %v105 = vsub.f32 1.5, %v104
    %v106 = vmul.f32 %v101, %v105
    %vm107 = vweird.f32 %v100
    %vm108 = vweird.f32 %v101
    %vm109 = vmor %vm107, %vm108
    %v110 = vsel %vm109, %v101, %v106
    %v111 = vmul.f32 %v98, %v110
    %v112 = vmul.f32 %v60, %v111
    %v113 = vsub.f32 %v99, %v112
    %115 = vset.pattern.permute.xlu0 0
    %116 = vperm.xlu0 %115, %v111
    %v117 = vpop.permute.xlu0 %116
    %v119 = vunpack.c.l.s4 839922192
    %v120 = vunpack.c.0.s8 %v119
    %v121 = vperm.slane %v117, %v120
    %v123 = vmul.f32 %v31, %v121
    %v124 = vmul.f32 %v32, %v121
    %126 = vset.pattern.permute.xlu0 0
    %127 = vperm.xlu0 %126, %v113
    %v128 = vpop.permute.xlu0 %127
    %v130 = vunpack.c.l.s4 839922192
    %v131 = vunpack.c.0.s8 %v130
    %v132 = vperm.slane %v128, %v131
    %v134 = vadd.f32 %v123, %v132
    %v135 = vadd.f32 %v124, %v132
    %136 = vst [vmem:[#allocation5] sm:$0xff] %v134
    %137 = vst [vmem:[#allocation5 + $0x8] sm:$0xff] %v135
    // Predicated region
    $region18: #{tpu_custom_call.1} parent=1 // pred_check
      _
    $region19: #{tpu_custom_call.1} parent=1 // pred_check_branch
      %139 = sbr.rel (0) target = $region21
    $region20: #{tpu_custom_call.1} parent=1 // pred_region
      %141 = vsyncadd [#allocation4], 0
      %s142 = sshll.u32 [#allocation5], 4
      %s143 = int_to_ptr.vmem [resolvable:$true] %s142
      %s144 = sshll.u32 %s3, 4
      %s145 = int_to_ptr.hbm [resolvable:$true] %s144
      %150 = dma.vmem_to_hbm [thread:$0]  %s143, 256, %s145, [#allocation4], 128, 128, 8
    $region21: #{tpu_custom_call.1} parent=1 // pred_fallthru
      _
    // Predicated region
    $region22: #{tpu_custom_call.1} parent=1 // pred_check
      _
    $region23: #{tpu_custom_call.1} parent=1 // pred_check_branch
      %152 = sbr.rel (0) target = $region25
    $region24: #{tpu_custom_call.1} parent=1 // pred_region
      %154 = dma.done [#allocation4], 256
    $region25: #{tpu_custom_call.1} parent=1 // pred_fallthru
      _
    %155 = vsyncpa [#allocation3], 1
    %156 = vsyncpa [#allocation4], 1

</llo_original>
